<compile_context>
chip_gen: v7x
topology: tpu7x:2x2x1
jax: 0.10.0
libtpu: 0.0.40
codegen_flags: <defaults>
</compile_context>

<pallas_src>
import math
from functools import partial

import jax
import jax.numpy as jnp
from jax.experimental import pallas as pl
from jax.experimental.pallas import tpu as pltpu

LRELU_SLOPE = 0.1
ACC_BYTES = 128 * 1024            # f32 accumulator budget (~half the vreg file)


def _tpu_defaults():
    """Generation-aware VMEM cap / max time tile (v5e/v6e: 128 MiB, v7x: 64)."""
    try:
        info = pltpu.get_tpu_info()
        vmem = getattr(info, "vmem_capacity_bytes", None) or (128 << 20)
    except Exception:
        vmem = 64 << 20
    if vmem >= (96 << 20):
        return 96 << 20, 512
    return 48 << 20, 256


VMEM_LIMIT_BYTES, MAX_TM = _tpu_defaults()


def _round_up(x, m):
    return ((x + m - 1) // m) * m


def _cdiv(a, b):
    return -(-a // b)


def _pick_tm(t_out, cout_eff):
    """Balanced time tile, capped so the f32 accumulator fits in registers."""
    acc_cap = max(8, (ACC_BYTES // (4 * max(cout_eff, 1))) // 8 * 8)
    cap = max(8, min(MAX_TM, acc_cap))
    n_tiles = _cdiv(max(t_out, 1), cap)
    return _round_up(_cdiv(max(t_out, 1), n_tiles), 8)


# ----------------------------------------------------------------------------
# Pallas kernels
# ----------------------------------------------------------------------------
def _conv_kernel(x_ref, w_ref, b_ref, *rest, tm, dil, ktaps,
                 pre_act, post_act, pre_slope, post_slope,
                 has_cbias, has_res, has_mask):
    """Fused conv: tap streaming from one pre-activated slab + bias +
    per-batch cond + post-activation + residual add + mask multiply."""
    i = 0
    c_ref = rest[i] if has_cbias else None
    i += 1 if has_cbias else 0
    r_ref = rest[i] if has_res else None
    i += 1 if has_res else 0
    m_ref = rest[i] if has_mask else None
    i += 1 if has_mask else 0
    o_ref = rest[i]

    t0 = pl.multiple_of(pl.program_id(1) * tm, 8)
    halo = dil * (ktaps - 1)
    xs = x_ref[0, pl.ds(t0, tm + halo), :]
    if pre_act == "leaky":                       # applied ONCE, not per tap
        xs = jnp.where(xs >= 0, xs, pre_slope * xs)
    xs = xs.astype(jnp.bfloat16)                 # cast ONCE (no-op if bf16 in)

    cout = o_ref.shape[-1]
    acc = jnp.zeros((tm, cout), jnp.float32)
    for k in range(ktaps):                       # unrolled tap streaming
        acc = acc + jnp.dot(xs[k * dil:k * dil + tm, :], w_ref[k],
                            preferred_element_type=jnp.float32)
    y = acc + b_ref[...]
    if has_cbias:
        y = y + c_ref[0]
    if post_act == "leaky":
        y = jnp.where(y >= 0, y, post_slope * y)
    elif post_act == "tanh":
        y = jnp.tanh(y)
    if has_res:
        y = y + r_ref[0].astype(jnp.float32)
    if has_mask:
        y = y * m_ref[0]
    o_ref[0] = y.astype(o_ref.dtype)


def _wn_gate_kernel(x_ref, wa_ref, wb_ref, ba_ref, bb_ref, *rest,
                    tm, dil, ktaps, has_cond):
    """WaveNet 'in' conv (+cond) + tanh*sigmoid gate, fused.

    tanh / sigmoid halves kept as separate weight tensors / accumulators so
    the epilogue never slices the lane axis.  No-cond variant skips the
    conditioning refs entirely (enc_p, gin=0)."""
    if has_cond:
        ca_ref, cb_ref, o_ref = rest
    else:
        (o_ref,) = rest
    t0 = pl.multiple_of(pl.program_id(1) * tm, 8)
    halo = dil * (ktaps - 1)
    xs = x_ref[0, pl.ds(t0, tm + halo), :].astype(jnp.bfloat16)

    hid = o_ref.shape[-1]
    acc_a = jnp.zeros((tm, hid), jnp.float32)
    acc_b = jnp.zeros((tm, hid), jnp.float32)
    for k in range(ktaps):
        xk = xs[k * dil:k * dil + tm, :]
        acc_a = acc_a + jnp.dot(xk, wa_ref[k], preferred_element_type=jnp.float32)
        acc_b = acc_b + jnp.dot(xk, wb_ref[k], preferred_element_type=jnp.float32)
    ya = acc_a + ba_ref[...]
    yb = acc_b + bb_ref[...]
    if has_cond:
        ya = ya + ca_ref[0]
        yb = yb + cb_ref[0]
    o_ref[0] = (jnp.tanh(ya) * jax.nn.sigmoid(yb)).astype(o_ref.dtype)


# ----------------------------------------------------------------------------
# Conv wrappers (channels-last, bf16 activation storage by default)
# ----------------------------------------------------------------------------
def conv1d_cl(x, w, b=None, *, padding=0, dilation=1, cbias=None,
              pre_act="none", post_act="none",
              pre_slope=LRELU_SLOPE, post_slope=LRELU_SLOPE,
              residual=None, mask=None, out_dtype=jnp.bfloat16):
    """x: (B, T, Cin);  w: (K, Cin, Cout) bf16;  b: (Cout,) or None.

    cbias   : optional (B, 1, Cout) per-batch additive conditioning.
    residual: optional (B, T_out, Cout) fused residual add.
    mask    : optional (B, T, 1) fused per-time multiply (after residual).
    """
    B, T, Cin = x.shape
    K, _, Cout = w.shape
    T_out = T + 2 * padding - dilation * (K - 1)
    tm = _pick_tm(T_out, Cout)
    T_out_p = _round_up(T_out, tm)
    T_in = T_out_p + dilation * (K - 1)
    if padding == 0 and T_in == T:
        xp = x
    else:
        xp = jnp.pad(x, ((0, 0), (padding, T_in - T - padding), (0, 0)))
    bias = (jnp.zeros((1, Cout), jnp.float32) if b is None
            else b.reshape(1, Cout).astype(jnp.float32))

    args = [xp, w, bias]
    in_specs = [
        pl.BlockSpec((1, T_in, Cin), lambda b_, m_: (b_, 0, 0)),
        pl.BlockSpec((K, Cin, Cout), lambda b_, m_: (0, 0, 0)),
        pl.BlockSpec((1, Cout), lambda b_, m_: (0, 0)),
    ]
    has_cbias = cbias is not None
    if has_cbias:
        args.append(cbias.astype(jnp.float32))
        in_specs.append(pl.BlockSpec((1, 1, Cout), lambda b_, m_: (b_, 0, 0)))
    has_res = residual is not None
    if has_res:
        rp = (residual if residual.shape[1] == T_out_p
              else jnp.pad(residual, ((0, 0), (0, T_out_p - residual.shape[1]), (0, 0))))
        args.append(rp)
        in_specs.append(pl.BlockSpec((1, tm, Cout), lambda b_, m_: (b_, m_, 0)))
    has_mask = mask is not None
    if has_mask:
        mp = (mask if mask.shape[1] == T_out_p
              else jnp.pad(mask, ((0, 0), (0, T_out_p - mask.shape[1]), (0, 0))))
        args.append(mp.astype(jnp.float32))
        in_specs.append(pl.BlockSpec((1, tm, 1), lambda b_, m_: (b_, m_, 0)))

    flops = 2 * B * T_out_p * K * Cin * Cout
    trans = B * T_out_p * Cout if post_act == "tanh" else 0
    out_itemsize = jnp.dtype(out_dtype).itemsize
    bytes_acc = (xp.size * xp.dtype.itemsize + w.size * 2
                 + B * T_out_p * Cout * out_itemsize)

    y = pl.pallas_call(
        partial(_conv_kernel, tm=tm, dil=dilation, ktaps=K,
                pre_act=pre_act, post_act=post_act,
                pre_slope=pre_slope, post_slope=post_slope,
                has_cbias=has_cbias, has_res=has_res, has_mask=has_mask),
        grid=(B, T_out_p // tm),
        in_specs=in_specs,
        out_specs=pl.BlockSpec((1, tm, Cout), lambda b_, m_: (b_, m_, 0)),
        out_shape=jax.ShapeDtypeStruct((B, T_out_p, Cout), out_dtype),
        compiler_params=pltpu.CompilerParams(
            dimension_semantics=("parallel", "parallel"),
            vmem_limit_bytes=VMEM_LIMIT_BYTES),
        cost_estimate=pl.CostEstimate(flops=flops, transcendentals=trans,
                                      bytes_accessed=bytes_acc),
    )(*args)
    return y if T_out_p == T_out else y[:, :T_out, :]


def wn_gate_conv(x, layer, *, padding, dilation, ca=None, cb=None):
    """Fused WN layer: dilated K-tap conv -> (+cond) -> tanh*sigmoid gate."""
    B, T, Cin = x.shape
    wa, wb = layer["wa"], layer["wb"]
    K, _, hid = wa.shape
    T_out = T + 2 * padding - dilation * (K - 1)
    tm = _pick_tm(T_out, 2 * hid)        # two accumulators
    T_out_p = _round_up(T_out, tm)
    T_in = T_out_p + dilation * (K - 1)
    if padding == 0 and T_in == T:
        xp = x
    else:
        xp = jnp.pad(x, ((0, 0), (padding, T_in - T - padding), (0, 0)))

    has_cond = ca is not None
    args = [xp, wa, wb, layer["ba"], layer["bb"]]
    in_specs = [
        pl.BlockSpec((1, T_in, Cin), lambda b_, m_: (b_, 0, 0)),
        pl.BlockSpec((K, Cin, hid), lambda b_, m_: (0, 0, 0)),
        pl.BlockSpec((K, Cin, hid), lambda b_, m_: (0, 0, 0)),
        pl.BlockSpec((1, hid), lambda b_, m_: (0, 0)),
        pl.BlockSpec((1, hid), lambda b_, m_: (0, 0)),
    ]
    if has_cond:
        args += [ca.astype(jnp.float32), cb.astype(jnp.float32)]
        in_specs += [pl.BlockSpec((1, 1, hid), lambda b_, m_: (b_, 0, 0)),
                     pl.BlockSpec((1, 1, hid), lambda b_, m_: (b_, 0, 0))]

    flops = 4 * B * T_out_p * K * Cin * hid
    trans = 2 * B * T_out_p * hid
    bytes_acc = (xp.size * xp.dtype.itemsize + wa.size * 2 + wb.size * 2
                 + B * T_out_p * hid * 2)

    y = pl.pallas_call(
        partial(_wn_gate_kernel, tm=tm, dil=dilation, ktaps=K, has_cond=has_cond),
        grid=(B, T_out_p // tm),
        in_specs=in_specs,
        out_specs=pl.BlockSpec((1, tm, hid), lambda b_, m_: (b_, m_, 0)),
        out_shape=jax.ShapeDtypeStruct((B, T_out_p, hid), jnp.bfloat16),
        compiler_params=pltpu.CompilerParams(
            dimension_semantics=("parallel", "parallel"),
            vmem_limit_bytes=VMEM_LIMIT_BYTES),
        cost_estimate=pl.CostEstimate(flops=flops, transcendentals=trans,
                                      bytes_accessed=bytes_acc),
    )(*args)
    return y if T_out_p == T_out else y[:, :T_out, :]


def conv_transpose1d_cl(x, wz, b, *, stride, ksz, padding, pre_slope=LRELU_SLOPE):
    """Polyphase-equivalent ConvTranspose1d: useful-MAC matmul + phase-wise
    shifted-reshape overlap-add (+bias), i.e. ~K/stride passes instead of K
    strided scatter-adds.

    x: (B, T, Cin);  wz: (1, Cin, ksz*Cout)  [wz[0,ci,k*Cout+co] == torch w[ci,co,k]]
    """
    B, T, _ = x.shape
    cout = wz.shape[-1] // ksz
    # leaky pre-activation fused into the matmul; only 1/stride of the
    # zero-stuffed MACs are performed.
    z = conv1d_cl(x, wz, None, padding=0, dilation=1,
                  pre_act="leaky", pre_slope=pre_slope)           # (B, T, K*Cout)
    z = z.reshape(B, T, ksz, cout)
    t_full = (T - 1) * stride + ksz
    if ksz % stride == 0:
        y = None
        for p_ in range(ksz // stride):                            # usually 2 phases
            seg = z[:, :, p_ * stride:(p_ + 1) * stride, :].reshape(B, T * stride, cout)
            seg = jnp.pad(seg, ((0, 0),
                                (p_ * stride, t_full - T * stride - p_ * stride),
                                (0, 0)))
            y = seg if y is None else y + seg
    else:
        # TODO(synk): general K % stride != 0 falls back to strided scatter-add.
        y = jnp.zeros((B, t_full, cout), z.dtype)
        for k in range(ksz):
            y = y.at[:, k: k + (T - 1) * stride + 1: stride, :].add(z[:, :, k, :])
    t_out = (T - 1) * stride + ksz - 2 * padding
    y = y + b.astype(y.dtype).reshape(1, 1, cout)
    return y[:, padding: padding + t_out, :].astype(jnp.bfloat16)


# ----------------------------------------------------------------------------
# Parameter init (deterministic, synthetic) — weights in kernel layout
# (K, Cin, Cout), bf16; biases f32.
# ----------------------------------------------------------------------------
class KeyGen:
    def __init__(self, seed=0):
        self.key = jax.random.PRNGKey(seed)

    def __call__(self):
        self.key, k = jax.random.split(self.key)
        return k


def init_conv(kg, cin, cout, ksz, bias=True, zero=False):
    scale = 1.0 / math.sqrt(max(cin * ksz, 1))
    if zero:
        w = jnp.zeros((ksz, cin, cout), jnp.float32)
        b = jnp.zeros((cout,), jnp.float32) if bias else None
    else:
        w = jax.random.uniform(kg(), (ksz, cin, cout), jnp.float32, -scale, scale)
        b = jax.random.uniform(kg(), (cout,), jnp.float32, -scale, scale) if bias else None
    return {"w": w.astype(jnp.bfloat16), "b": b}


def init_wn(kg, hid, ksz, n_layers, gin):
    p = {"in": [], "res_skip": [], "cond": None}
    for i in range(n_layers):
        scale = 1.0 / math.sqrt(hid * ksz)
        w = jax.random.uniform(kg(), (ksz, hid, 2 * hid), jnp.float32, -scale, scale)
        bvec = jax.random.uniform(kg(), (2 * hid,), jnp.float32, -scale, scale)
        p["in"].append({
            "wa": w[:, :, :hid].astype(jnp.bfloat16),   # tanh half
            "wb": w[:, :, hid:].astype(jnp.bfloat16),   # sigmoid half
            "ba": bvec[:hid].reshape(1, hid),
            "bb": bvec[hid:].reshape(1, hid),
        })
        if i < n_layers - 1:
            rs = init_conv(kg, hid, 2 * hid, 1)          # split res / skip halves
            p["res_skip"].append({
                "w_res": rs["w"][:, :, :hid],
                "b_res": rs["b"][:hid],
                "w_skip": rs["w"][:, :, hid:],
                "b_skip": rs["b"][hid:],
            })
        else:
            p["res_skip"].append(init_conv(kg, hid, hid, 1))
    if gin:
        p["cond"] = init_conv(kg, gin, 2 * hid * n_layers, 1)
    return p


def init_encoder(kg, in_ch, out_ch, hid, ksz, n_layers, gin=0, cond_f0=False):
    return {
        "pre": init_conv(kg, in_ch, hid, 1),
        "proj": init_conv(kg, hid, 2 * out_ch, 1),
        "wn": init_wn(kg, hid, ksz, n_layers, gin),
        "f0_emb": (0.01 * jax.random.normal(kg(), (256, hid), jnp.float32))
        if cond_f0 else None,
    }


def init_coupling(kg, channels, hid, ksz, n_layers, gin):
    half = channels // 2
    return {
        "pre": init_conv(kg, half, hid, 1),
        "wn": init_wn(kg, hid, ksz, n_layers, gin),
        "post": init_conv(kg, hid, half, 1, zero=True),   # matches PyTorch zero-init
    }


def init_generator(kg, cfg):
    uic = cfg["upsample_initial_channel"]
    p = {
        "conv_pre": init_conv(kg, cfg["inter_channels"], uic, 7),
        "cond": init_conv(kg, cfg["gin_channels"], uic, 1),
        "ups": [],
        "resblocks": [],
    }
    ch = uic
    for i, (u, k) in enumerate(zip(cfg["upsample_rates"], cfg["upsample_kernel_sizes"])):
        cin = uic // 2 ** i
        cout = uic // 2 ** (i + 1)
        scale = 1.0 / math.sqrt(max(cin * k, 1))
        wt = jax.random.uniform(kg(), (cin, cout, k), jnp.float32, -scale, scale)
        wz = jnp.transpose(wt, (0, 2, 1)).reshape(cin, k * cout)[None]  # (1,Cin,K*Cout)
        p["ups"].append({
            "wz": wz.astype(jnp.bfloat16),
            "b": jax.random.uniform(kg(), (cout,), jnp.float32, -scale, scale),
        })
        ch = cout
        for rk, rd in zip(cfg["resblock_kernel_sizes"], cfg["resblock_dilation_sizes"]):
            p["resblocks"].append({
                "convs1": [init_conv(kg, ch, ch, rk) for _ in rd],
                "convs2": [init_conv(kg, ch, ch, rk) for _ in rd],
            })
    p["conv_post"] = init_conv(kg, ch, 1, 7, bias=False)
    return p


# ----------------------------------------------------------------------------
# Forward passes (channels-last)
# ----------------------------------------------------------------------------
def f0_to_coarse(f0):
    f0_bin, f0_max, f0_min = 256, 1100.0, 50.0
    f0_mel_min = 1127.0 * math.log(1 + f0_min / 700.0)
    f0_mel_max = 1127.0 * math.log(1 + f0_max / 700.0)
    f0 = jnp.clip(f0, f0_min, f0_max)
    f0_mel = 1127.0 * jnp.log(1 + f0 / 700.0)
    f0_mel = jnp.where(
        f0_mel > 0,
        (f0_mel - f0_mel_min) * (f0_bin - 2) / (f0_mel_max - f0_mel_min) + 1,
        f0_mel,
    )
    f0_mel = jnp.where(f0_mel <= 1, 1.0, f0_mel)
    f0_mel = jnp.where(f0_mel > f0_bin - 1, float(f0_bin - 1), f0_mel)
    return (f0_mel + 0.5).astype(jnp.int32)


def wn_forward(p, x, x_mask, hid, ksz, dil_rate, n_layers, g=None):
    """WN with the res/skip split, residual adds and mask multiplies fused into
    the 1x1 conv epilogues (no standalone XLA elementwise passes)."""
    B, T, _ = x.shape
    output = jnp.zeros((B, T, hid), jnp.float32)      # skip stream kept f32
    g_cond = None
    if g is not None and p["cond"] is not None:
        g_cond = conv1d_cl(g, p["cond"]["w"], p["cond"]["b"],
                           out_dtype=jnp.float32)     # (B, 1, 2H*n_layers)
    for i in range(n_layers):
        dilation = dil_rate ** i
        pad = (ksz * dilation - dilation) // 2
        if g_cond is not None:
            ca = g_cond[:, :, i * 2 * hid: i * 2 * hid + hid]
            cb = g_cond[:, :, i * 2 * hid + hid: (i + 1) * 2 * hid]
        else:
            ca = cb = None                            # no-cond kernel variant
        acts = wn_gate_conv(x, p["in"][i], padding=pad, dilation=dilation,
                            ca=ca, cb=cb)
        rs = p["res_skip"][i]
        if i < n_layers - 1:
            # x = (x + res_acts) * x_mask     (fused residual + mask)
            x = conv1d_cl(acts, rs["w_res"], rs["b_res"],
                          residual=x, mask=x_mask)
            # output = output + skip_acts     (fused residual)
            output = conv1d_cl(acts, rs["w_skip"], rs["b_skip"],
                               residual=output, out_dtype=jnp.float32)
        else:
            # output = (output + skip_acts) * x_mask  (mask fused into epilogue)
            output = conv1d_cl(acts, rs["w"], rs["b"],
                               residual=output, mask=x_mask,
                               out_dtype=jnp.float32)
    return output


def encoder_forward(p, x, x_lengths, out_ch, hid, ksz, dil, n_layers,
                    g=None, f0=None, noise_key=None, compute_z=True):
    B, T, _ = x.shape
    x_mask = (jnp.arange(T)[None, :] < x_lengths[:, None]).astype(jnp.float32)[:, :, None]
    h = conv1d_cl(x, p["pre"]["w"], p["pre"]["b"], mask=x_mask)
    if p["f0_emb"] is not None:
        emb = p["f0_emb"][f0]                                   # (B, 1, T, H)
        h = (h + jnp.squeeze(emb, 1)).astype(jnp.bfloat16)
    h = wn_forward(p["wn"], h, x_mask, hid, ksz, dil, n_layers, g=g)
    stats = conv1d_cl(h, p["proj"]["w"], p["proj"]["b"], mask=x_mask,
                      out_dtype=jnp.float32)
    m, logs = stats[..., :out_ch], stats[..., out_ch:]
    if compute_z:
        eps = jax.random.normal(noise_key, m.shape, m.dtype)
        z = (m + eps * jnp.exp(logs)) * x_mask
    else:
        z = None                                                # enc_p: z unused
    return z, m, logs, x_mask


def flow_forward(flows, x, x_mask, hid, ksz, dil, n_layers, g=None):
    half = x.shape[-1] // 2
    for p in flows:
        # ResidualCouplingLayer (mean_only=True)
        x0, x1 = x[..., :half], x[..., half:]
        h = conv1d_cl(x0, p["pre"]["w"], p["pre"]["b"], mask=x_mask)
        h = wn_forward(p["wn"], h, x_mask, hid, ksz, dil, n_layers, g=g)
        m = conv1d_cl(h, p["post"]["w"], p["post"]["b"], mask=x_mask,
                      out_dtype=jnp.float32)
        x1 = m + x1 * x_mask                                    # logs == 0
        x = jnp.concatenate([x0, x1], axis=-1)
        # TODO(synk): the channel flip could be folded into the next layer's
        # `pre` weights at init; kept explicit (inter_channels is tiny).
        x = x[..., ::-1]
    return x


def resblock1_forward(p, x, ksz, dilations):
    for c1, c2, d in zip(p["convs1"], p["convs2"], dilations):
        xt = conv1d_cl(x, c1["w"], c1["b"], padding=(ksz * d - d) // 2, dilation=d,
                       pre_act="leaky", pre_slope=LRELU_SLOPE)
        x = conv1d_cl(xt, c2["w"], c2["b"], padding=(ksz - 1) // 2, dilation=1,
                      pre_act="leaky", pre_slope=LRELU_SLOPE, residual=x)
    return x


def generator_forward(p, x, g_cl, cfg):
    gc = conv1d_cl(g_cl, p["cond"]["w"], p["cond"]["b"], out_dtype=jnp.float32)
    x = conv1d_cl(x, p["conv_pre"]["w"], p["conv_pre"]["b"], padding=3, cbias=gc)
    nk = len(cfg["resblock_kernel_sizes"])
    for i, (u, k) in enumerate(zip(cfg["upsample_rates"], cfg["upsample_kernel_sizes"])):
        # leaky_relu fused as pre-activation of the transpose-conv matmul
        x = conv_transpose1d_cl(x, p["ups"][i]["wz"], p["ups"][i]["b"],
                                stride=u, ksz=k, padding=(k - u) // 2,
                                pre_slope=LRELU_SLOPE)
        xs = None
        for j in range(nk):
            rb = p["resblocks"][i * nk + j]
            r = resblock1_forward(rb, x, cfg["resblock_kernel_sizes"][j],
                                  cfg["resblock_dilation_sizes"][j])
            xs = r if xs is None else xs + r
        x = xs / nk
    # F.leaky_relu (slope 0.01) + conv_post + tanh fused into one kernel.
    # TODO(synk): Cout=1 output is lane-sparse; a time-as-lanes layout for the
    # final conv would further help store-bound v5e.
    x = conv1d_cl(x, p["conv_post"]["w"], None, padding=3,
                  pre_act="leaky", pre_slope=0.01, post_act="tanh",
                  out_dtype=jnp.float32)
    return x                                                     # (B, T_wav, 1)


def rand_slice_segments_cl(x, x_lengths, segment_size, key):
    B, T, D = x.shape
    ids_str_max = x_lengths - segment_size + 1
    r = jax.random.uniform(key, (B,))
    ids_str = (r * ids_str_max.astype(jnp.float32)).astype(jnp.int32)

    def sl(xb, idx):
        return jax.lax.dynamic_slice(xb, (idx, 0), (segment_size, D))

    return jax.vmap(sl)(x, ids_str), ids_str


def synthesizer_forward(params, cfg, spec, c, g, mel, c_lengths, spec_lengths,
                        pitch, rng_key):
    assert c.shape[2] == mel.shape[2]
    pitch_c = f0_to_coarse(pitch)                                # coarse_f0 = True
    k1, k2 = jax.random.split(rng_key, 2)

    # single layout change at the model boundary: NCT -> NTC
    c_cl = jnp.transpose(c, (0, 2, 1))
    spec_cl = jnp.transpose(spec, (0, 2, 1))
    g_cl = jnp.transpose(g, (0, 2, 1))                           # (B, 1, gin)

    _, m_p, logs_p, _ = encoder_forward(
        params["enc_p"], c_cl, c_lengths, out_ch=cfg["inter_channels"],
        hid=cfg["hidden_channels"], ksz=5, dil=1, n_layers=16,
        g=None, f0=pitch_c, noise_key=None, compute_z=False)

    z, m_q, logs_q, spec_mask = encoder_forward(
        params["enc_q"], spec_cl, spec_lengths, out_ch=cfg["inter_channels"],
        hid=cfg["hidden_channels"], ksz=5, dil=1, n_layers=16,
        g=g_cl, f0=None, noise_key=k1, compute_z=True)

    z_p = flow_forward(params["flow"], z, spec_mask,
                       hid=cfg["hidden_channels"], ksz=5, dil=1, n_layers=4, g=g_cl)

    z_slice, ids_slice = rand_slice_segments_cl(z, spec_lengths, cfg["segment_size"], k2)
    o = generator_forward(params["dec"], z_slice, g_cl, cfg)

    to_nct = lambda a: jnp.transpose(a, (0, 2, 1))
    return (to_nct(o), ids_slice, to_nct(spec_mask),
            (to_nct(z), to_nct(z_p), to_nct(m_p), to_nct(logs_p),
             to_nct(m_q), to_nct(logs_q)))


# ----------------------------------------------------------------------------
# Main
# ----------------------------------------------------------------------------
if __name__ == "__main__":
    CFG = dict(
        spec_channels=10,
        segment_size=8,
        inter_channels=8,
        hidden_channels=16,
        c_dim=8,
        gin_channels=4,
        resblock="1",
        resblock_kernel_sizes=[3],
        resblock_dilation_sizes=[[1, 3, 5]],
        upsample_rates=[2, 2],
        upsample_initial_channel=16,
        upsample_kernel_sizes=[4, 4],
    )

    kg = KeyGen(0)
    params = {
        "enc_p": init_encoder(kg, CFG["c_dim"], CFG["inter_channels"],
                              CFG["hidden_channels"], 5, 16, gin=0, cond_f0=True),
        "enc_q": init_encoder(kg, CFG["spec_channels"], CFG["inter_channels"],
                              CFG["hidden_channels"], 5, 16,
                              gin=CFG["gin_channels"], cond_f0=False),
        "flow": [init_coupling(kg, CFG["inter_channels"], CFG["hidden_channels"],
                               5, 4, CFG["gin_channels"]) for _ in range(4)],
        "dec": init_generator(kg, CFG),
    }

    data_key = jax.random.PRNGKey(0)
    ks = jax.random.split(data_key, 6)
    B, T = 2, 16
    spec = jax.random.normal(ks[0], (B, CFG["spec_channels"], T), jnp.float32)
    c = jax.random.normal(ks[1], (B, CFG["c_dim"], T), jnp.float32)
    mel = jax.random.normal(ks[2], (B, 8, T), jnp.float32)
    g = jax.random.normal(ks[3], (B, CFG["gin_channels"], 1), jnp.float32)
    pitch = jax.random.uniform(ks[4], (B, 1, T), jnp.float32, 80.0, 400.0)
    c_lengths = jnp.array([16, 12], jnp.int32)
    spec_lengths = jnp.array([16, 12], jnp.int32)

    out = synthesizer_forward(params, CFG, spec, c, g, mel,
                              c_lengths, spec_lengths, pitch, ks[5])
    o, ids_slice, spec_mask, (z, z_p, m_p, logs_p, m_q, logs_q) = out
    jax.block_until_ready(o)
    jax.block_until_ready(z_p)

    # sanity: waveform = (B, 1, segment_size * prod(upsample_rates))
    assert o.shape == (B, 1, CFG["segment_size"] * 4)
    assert z.shape == (B, CFG["inter_channels"], T)
    assert z_p.shape == (B, CFG["inter_channels"], T)
    assert spec_mask.shape == (B, 1, T)
    print("KERNEL_OK")
</pallas_src>

<mosaic_0001>
module attributes {stable_mosaic.version = 11 : i64} {
  func.func @_conv_kernel(%arg0: i32, %arg1: i32, %arg2: memref<1x16x8xf32, #tpu.memory_space<vmem>>, %arg3: memref<1x8x16xbf16, #tpu.memory_space<vmem>>, %arg4: memref<1x16xf32, #tpu.memory_space<vmem>>, %arg5: memref<1x16x1xf32, #tpu.memory_space<vmem>>, %arg6: memref<1x16x16xbf16, #tpu.memory_space<vmem>>) attributes {dimension_semantics = [#tpu.dimension_semantics<parallel>, #tpu.dimension_semantics<parallel>], iteration_bounds = array<i64: 2, 1>, scalar_prefetch = 0 : i64, scratch_operands = 0 : i64, tpu.core_type = #tpu.core_type<tc>, window_params = [{transform_indices = @transform_0, window_bounds = array<i64: 1, 16, 8>}, {pipeline_mode = #tpu.pipeline_mode<synchronous>, transform_indices = @transform_1, window_bounds = array<i64: 1, 8, 16>}, {pipeline_mode = #tpu.pipeline_mode<synchronous>, transform_indices = @transform_2, window_bounds = array<i64: 1, 16>}, {transform_indices = @transform_3, window_bounds = array<i64: 1, 16, 1>}, {transform_indices = @transform_4, window_bounds = array<i64: 1, 16, 16>}]} {
    %c16_i32 = arith.constant 16 : i32
    %0 = arith.muli %arg1, %c16_i32 : i32
    %1 = tpu.assume_multiple %0, 8 : i32
    %c0 = arith.constant 0 : index
    %2 = arith.index_cast %1 : i32 to index
    %c0_0 = arith.constant 0 : index
    %3 = vector.load %arg2[%c0, %2, %c0_0] : memref<1x16x8xf32, #tpu.memory_space<vmem>>, vector<1x16x8xf32>
    %4 = vector.shape_cast %3 : vector<1x16x8xf32> to vector<16x8xf32>
    %5 = arith.truncf %4 : vector<16x8xf32> to vector<16x8xbf16>
    %cst = arith.constant 0.000000e+00 : f32
    %6 = vector.broadcast %cst : f32 to vector<16x16xf32>
    %c0_1 = arith.constant 0 : index
    %c0_2 = arith.constant 0 : index
    %c0_3 = arith.constant 0 : index
    %7 = vector.load %arg3[%c0_1, %c0_2, %c0_3] : memref<1x8x16xbf16, #tpu.memory_space<vmem>>, vector<1x8x16xbf16>
    %8 = vector.shape_cast %7 : vector<1x8x16xbf16> to vector<8x16xbf16>
    %cst_4 = arith.constant dense<0.000000e+00> : vector<16x16xf32>
    %9 = tpu.matmul %5, %8, %cst_4 {dimension_numbers = #tpu.dot_dimension_numbers<[1], [0], [0], [1], [0, 0, 1, 1], [], []>} : vector<16x8xbf16>, vector<8x16xbf16>, vector<16x16xf32> -> vector<16x16xf32>
    %10 = arith.addf %6, %9 : vector<16x16xf32>
    %c0_5 = arith.constant 0 : index
    %c0_6 = arith.constant 0 : index
    %11 = vector.load %arg4[%c0_5, %c0_6] : memref<1x16xf32, #tpu.memory_space<vmem>>, vector<1x16xf32>
    %12 = vector.broadcast %11 : vector<1x16xf32> to vector<16x16xf32>
    %13 = arith.addf %10, %12 : vector<16x16xf32>
    %c0_7 = arith.constant 0 : index
    %c0_8 = arith.constant 0 : index
    %c0_9 = arith.constant 0 : index
    %14 = vector.load %arg5[%c0_7, %c0_8, %c0_9] : memref<1x16x1xf32, #tpu.memory_space<vmem>>, vector<1x16x1xf32>
    %15 = vector.shape_cast %14 : vector<1x16x1xf32> to vector<16x1xf32>
    %16 = vector.broadcast %15 : vector<16x1xf32> to vector<16x16xf32>
    %17 = arith.mulf %13, %16 : vector<16x16xf32>
    %18 = arith.truncf %17 : vector<16x16xf32> to vector<16x16xbf16>
    %c0_10 = arith.constant 0 : index
    %c0_11 = arith.constant 0 : index
    %c0_12 = arith.constant 0 : index
    %19 = vector.load %arg6[%c0_10, %c0_11, %c0_12] : memref<1x16x16xbf16, #tpu.memory_space<vmem>>, vector<1x16x16xbf16>
    %20 = vector.shape_cast %19 : vector<1x16x16xbf16> to vector<16x16xbf16>
    %21 = vector.shape_cast %18 : vector<16x16xbf16> to vector<1x16x16xbf16>
    tpu.vector_store %arg6[%c0_10, %c0_11, %c0_12], %21 {strides = array<i32>} : memref<1x16x16xbf16, #tpu.memory_space<vmem>>, vector<1x16x16xbf16>,
    return
  }
  func.func @transform_0(%arg0: i32, %arg1: i32) -> (i32, i32, i32) {
    %c0_i32 = arith.constant 0 : i32
    %c0_i32_0 = arith.constant 0 : i32
    %c0_i32_1 = arith.constant 0 : i32
    return %arg0, %c0_i32, %c0_i32_0 : i32, i32, i32
  }
  func.func @transform_1(%arg0: i32, %arg1: i32) -> (i32, i32, i32) {
    %c0_i32 = arith.constant 0 : i32
    %c0_i32_0 = arith.constant 0 : i32
    %c0_i32_1 = arith.constant 0 : i32
    %c0_i32_2 = arith.constant 0 : i32
    return %c0_i32, %c0_i32_0, %c0_i32_1 : i32, i32, i32
  }
  func.func @transform_2(%arg0: i32, %arg1: i32) -> (i32, i32) {
    %c0_i32 = arith.constant 0 : i32
    %c0_i32_0 = arith.constant 0 : i32
    %c0_i32_1 = arith.constant 0 : i32
    return %c0_i32, %c0_i32_0 : i32, i32
  }
  func.func @transform_3(%arg0: i32, %arg1: i32) -> (i32, i32, i32) {
    %c0_i32 = arith.constant 0 : i32
    %c0_i32_0 = arith.constant 0 : i32
    return %arg0, %arg1, %c0_i32 : i32, i32, i32
  }
  func.func @transform_4(%arg0: i32, %arg1: i32) -> (i32, i32, i32) {
    %c0_i32 = arith.constant 0 : i32
    %c0_i32_0 = arith.constant 0 : i32
    return %arg0, %arg1, %c0_i32 : i32, i32, i32
  }
}

</mosaic_0001>

<llo_original>
// kernel: tpu_custom_call.1
$region0: #{tpu_custom_call.1}
  #allocation0 [shape = 'u32[]', space=smem, size = 0x4, offset = 0x4, fixed_abs, tag = 'smem constant byte address 0x4 - core index']
  #allocation1 [shape = 'u32[144,128]{1,0:T(1,128)}', space=vmem, size = 0x12000, scoped, tag = 'internal scratch']
  %s0 = inlined_call_operand.vmem [shape: f32[2,16,8], index: 0, kind: input, shape index: {}]
  %s1 = inlined_call_operand.vmem [shape: bf16[1,8,16], index: 1, kind: input, shape index: {}]
  %s2 = inlined_call_operand.vmem [shape: f32[1,16], index: 2, kind: input, shape index: {}]
  %s3 = inlined_call_operand.vmem [shape: f32[2,16,1], index: 3, kind: input, shape index: {}]
  %s4 = inlined_call_operand.hbm [shape: bf16[2,16,16], index: 4, kind: output, shape index: {}]
  %s5 = sld [smem:[#allocation0]]
  $region49: #{tpu_custom_call.1} parent=0
    _
  %s7 = ssub.s32 1, %s5
  %s8 = scalar_select 0, %s7, %s5
  $region1: #{tpu_custom_call.1} parent=0
    #allocation2 [shape = 'u8[8192]{0}', space=vmem, size = 0x2000, scoped, tag = 'output window, operand 0']
    #allocation3 [shape = 's32[2]{0}', space=sflag, size = 0x8, scoped, tag = 'scoped memory for tpu_custom_call.1']
    %9 = vsyncpa [#allocation3], 0
    %s10 = scalar_lea.sflag [#allocation3], 1
    %11 = vsyncpa %s10, 0
    loop: start=0, step=1, limit=4
    $region2: #{tpu_custom_call.1} parent=1 // loop_pre_header
      _
    $region3: #{tpu_custom_call.1} parent=1 // loop_header
      %s13 = sphi 0, %s17
      %p14 = scmp.ge.s32.totalorder %s13, 4
      %s20 = sphi 0, %s32
      %s21 = sphi 0, %s28
      %s22 = sphi 0, %s20
      %s23 = sphi 0, %s21
      %s24 = sphi 0, %s22
      %s25 = sphi 0, %s23
      %s35 = sphi 0, %s37
      %s38 = sphi 0, %s35
      %s39 = sphi 0, %s38
      %s55 = sphi 0, %s39
      %s59 = sphi 0, %s59
      %s61 = sphi 0, %s59
      %s62 = sphi 0, %s61
      %s76 = sphi 0, %s62
      %s80 = sphi 0, %s80
      %s82 = sphi 0, %s80
      %s83 = sphi 0, %s82
      %s97 = sphi 0, %s83
      %s105 = sphi 0, %s107
      %s108 = sphi 0, %s105
      %s109 = sphi 0, %s108
      %s125 = sphi 0, %s109
      %s133 = sphi 0, %s135
      %s136 = sphi 0, %s133
      %s137 = sphi 0, %s136
      %s153 = sphi 0, %s137
    $region4: #{tpu_custom_call.1} parent=1 // loop_header_branch
      %16 = sbr.rel (%p14) target = $region8
    $region5: #{tpu_custom_call.1} parent=1 // loop_body
      %s18 = ssub.s32 %s13, 1
      %s19 = ssub.s32 %s13, 2
      %s26 = sadd.s32 1, %s21
      %p27 = scmp.ge.s32.totalorder %s26, 1
      %s28 = scalar_select %p27, 0, %s26
      %s29 = sadd.s32 1, %s20
      %s30 = scalar_select %p27, %s29, %s20
      %p31 = scmp.ge.s32.totalorder %s30, 2
      %s32 = scalar_select %p31, 0, %s30
      %s33 = ssub.s32 %s20, %s32
      %p34 = scmp.eq.s32.totalorder %s33, 0
      %s36 = sadd.s32 %s35, 1
      %s37 = scalar_select %p34, %s35, %s36
      %p40 = pneg %p34
      %p41 = scmp.eq.s32.totalorder %s13, 1
      %p42 = por %p40, %p41
      %p43 = scmp.ne.s32.totalorder %s35, %s38
      %p44 = scmp.eq.s32.totalorder %s13, 0
      %p45 = por %p43, %p44
      %p46 = scmp.ne.s32.totalorder %s35, %s38
      %p47 = scmp.eq.s32.totalorder %s18, 1
      %p48 = por %p46, %p47
      %p49 = scmp.ne.s32.totalorder %s38, %s39
      %p50 = scmp.eq.s32.totalorder %s18, 0
      %p51 = por %p49, %p50
      %p52 = scmp.ne.s32.totalorder %s38, %s39
      %p53 = scmp.eq.s32.totalorder %s19, 1
      %p54 = por %p52, %p53
      %p56 = scmp.ne.s32.totalorder %s39, %s55
      %p57 = scmp.eq.s32.totalorder %s19, 0
      %p58 = por %p56, %p57
      %s60 = sadd.s32 %s59, 1
      %p63 = scmp.eq.s32.totalorder %s13, 1
      %p64 = scmp.ne.s32.totalorder %s59, %s61
      %p65 = scmp.eq.s32.totalorder %s13, 0
      %p66 = por %p64, %p65
      %p67 = scmp.ne.s32.totalorder %s59, %s61
      %p68 = scmp.eq.s32.totalorder %s18, 1
      %p69 = por %p67, %p68
      %p70 = scmp.ne.s32.totalorder %s61, %s62
      %p71 = scmp.eq.s32.totalorder %s18, 0
      %p72 = por %p70, %p71
      %p73 = scmp.ne.s32.totalorder %s61, %s62
      %p74 = scmp.eq.s32.totalorder %s19, 1
      %p75 = por %p73, %p74
      %p77 = scmp.ne.s32.totalorder %s62, %s76
      %p78 = scmp.eq.s32.totalorder %s19, 0
      %p79 = por %p77, %p78
      %s81 = sadd.s32 %s80, 1
      %p84 = scmp.eq.s32.totalorder %s13, 1
      %p85 = scmp.ne.s32.totalorder %s80, %s82
      %p86 = scmp.eq.s32.totalorder %s13, 0
      %p87 = por %p85, %p86
      %p88 = scmp.ne.s32.totalorder %s80, %s82
      %p89 = scmp.eq.s32.totalorder %s18, 1
      %p90 = por %p88, %p89
      %p91 = scmp.ne.s32.totalorder %s82, %s83
      %p92 = scmp.eq.s32.totalorder %s18, 0
      %p93 = por %p91, %p92
      %p94 = scmp.ne.s32.totalorder %s82, %s83
      %p95 = scmp.eq.s32.totalorder %s19, 1
      %p96 = por %p94, %p95
      %p98 = scmp.ne.s32.totalorder %s83, %s97
      %p99 = scmp.eq.s32.totalorder %s19, 0
      %p100 = por %p98, %p99
      %s101 = ssub.s32 %s20, %s32
      %s102 = ssub.s32 %s21, %s28
      %s103 = sor.u32 %s101, %s102
      %p104 = scmp.eq.s32.totalorder %s103, 0
      %s106 = sadd.s32 %s105, 1
      %s107 = scalar_select %p104, %s105, %s106
      %p110 = pneg %p104
      %p111 = scmp.eq.s32.totalorder %s13, 1
      %p112 = por %p110, %p111
      %p113 = scmp.ne.s32.totalorder %s105, %s108
      %p114 = scmp.eq.s32.totalorder %s13, 0
      %p115 = por %p113, %p114
      %p116 = scmp.ne.s32.totalorder %s105, %s108
      %p117 = scmp.eq.s32.totalorder %s18, 1
      %p118 = por %p116, %p117
      %p119 = scmp.ne.s32.totalorder %s108, %s109
      %p120 = scmp.eq.s32.totalorder %s18, 0
      %p121 = por %p119, %p120
      %p122 = scmp.ne.s32.totalorder %s108, %s109
      %p123 = scmp.eq.s32.totalorder %s19, 1
      %p124 = por %p122, %p123
      %p126 = scmp.ne.s32.totalorder %s109, %s125
      %p127 = scmp.eq.s32.totalorder %s19, 0
      %p128 = por %p126, %p127
      %s129 = ssub.s32 %s20, %s32
      %s130 = ssub.s32 %s21, %s28
      %s131 = sor.u32 %s129, %s130
      %p132 = scmp.eq.s32.totalorder %s131, 0
      %s134 = sadd.s32 %s133, 1
      %s135 = scalar_select %p132, %s133, %s134
      %p138 = pneg %p132
      %p139 = scmp.eq.s32.totalorder %s13, 1
      %p140 = por %p138, %p139
      %p141 = scmp.ne.s32.totalorder %s133, %s136
      %p142 = scmp.eq.s32.totalorder %s13, 0
      %p143 = por %p141, %p142
      %p144 = scmp.ne.s32.totalorder %s133, %s136
      %p145 = scmp.eq.s32.totalorder %s18, 1
      %p146 = por %p144, %p145
      %p147 = scmp.ne.s32.totalorder %s136, %s137
      %p148 = scmp.eq.s32.totalorder %s18, 0
      %p149 = por %p147, %p148
      %p150 = scmp.ne.s32.totalorder %s136, %s137
      %p151 = scmp.eq.s32.totalorder %s19, 1
      %p152 = por %p150, %p151
      %p154 = scmp.ne.s32.totalorder %s137, %s153
      %p155 = scmp.eq.s32.totalorder %s19, 0
      %p156 = por %p154, %p155
      %p157 = scmp.le.s32.totalorder 1, %s13
      %p158 = scmp.lt.s32.totalorder %s13, 3
      %p159 = pnand %p157, %p158
      %p160 = pneg %p159
      // Predicated region
      $region9: #{tpu_custom_call.1} parent=5 // pred_check
        _
      $region10: #{tpu_custom_call.1} parent=5 // pred_check_branch
        %162 = sbr.rel (%p159) target = $region12
      $region11: #{tpu_custom_call.1} parent=5 // pred_region
        %s163 = ssub.s32 %s13, 1
        // Predicated region
        $region13: #{tpu_custom_call.1} parent=11 // pred_check
          %p164 = pneg %p72
        $region14: #{tpu_custom_call.1} parent=11 // pred_check_branch
          %166 = sbr.rel (%p164) target = $region16
        $region15: #{tpu_custom_call.1} parent=11 // pred_region
          _
        $region16: #{tpu_custom_call.1} parent=11 // pred_fallthru
          _
        // Predicated region
        $region17: #{tpu_custom_call.1} parent=11 // pred_check
          %p167 = pneg %p93
        $region18: #{tpu_custom_call.1} parent=11 // pred_check_branch
          %169 = sbr.rel (%p167) target = $region20
        $region19: #{tpu_custom_call.1} parent=11 // pred_region
          _
        $region20: #{tpu_custom_call.1} parent=11 // pred_fallthru
          _
      $region12: #{tpu_custom_call.1} parent=5 // pred_fallthru
        _
      %p170 = scmp.lt.s32.totalorder %s13, 2
      // Predicated region
      $region21: #{tpu_custom_call.1} parent=5 // pred_check
        %p171 = pneg %p170
      $region22: #{tpu_custom_call.1} parent=5 // pred_check_branch
        %173 = sbr.rel (%p171) target = $region24
      $region23: #{tpu_custom_call.1} parent=5 // pred_region
        // Predicated region
        $region25: #{tpu_custom_call.1} parent=23 // pred_check
          %p174 = pneg %p45
        $region26: #{tpu_custom_call.1} parent=23 // pred_check_branch
          %176 = sbr.rel (%p174) target = $region28
        $region27: #{tpu_custom_call.1} parent=23 // pred_region
          %p177 = scmp.lt.s32.totalorder %s20, 1
          %s178 = scalar_select %p177, %s20, 1
          %s179 = smul.addr %s178, 2
          %s180 = smul.addr %s179, 8
          %s181 = scalar_lea.vmem %s0, %s180
        $region28: #{tpu_custom_call.1} parent=23 // pred_fallthru
          _
        // Predicated region
        $region29: #{tpu_custom_call.1} parent=23 // pred_check
          %p182 = pneg %p115
        $region30: #{tpu_custom_call.1} parent=23 // pred_check_branch
          %184 = sbr.rel (%p182) target = $region32
        $region31: #{tpu_custom_call.1} parent=23 // pred_region
          %s185 = smul.u32 2, %s21
          %p186 = scmp.lt.s32.totalorder %s20, 1
          %s187 = scalar_select %p186, %s20, 1
          %p188 = scmp.lt.s32.totalorder %s185, 1
          %s189 = scalar_select %p188, %s185, 1
          %s190 = smul.addr %s187, 2
          %s191 = sadd.s32 %s189, %s190
          %s192 = smul.addr %s191, 8
          %s193 = scalar_lea.vmem %s3, %s192
          %s194 = smul.u32 2, %s21
        $region32: #{tpu_custom_call.1} parent=23 // pred_fallthru
          _
      $region24: #{tpu_custom_call.1} parent=5 // pred_fallthru
        _
      %p195 = scmp.le.s32.totalorder 1, %s13
      %p196 = scmp.lt.s32.totalorder %s13, 3
      %p197 = pnand %p195, %p196
      %p198 = pneg %p197
      // Predicated region
      $region33: #{tpu_custom_call.1} parent=5 // pred_check
        _
      $region34: #{tpu_custom_call.1} parent=5 // pred_check_branch
        %200 = sbr.rel (%p197) target = $region36
      $region35: #{tpu_custom_call.1} parent=5 // pred_region
        %s201 = ssub.s32 %s13, 1
        %p202 = scmp.lt.s32.totalorder %s22, 1
        %s203 = scalar_select %p202, %s22, 1
        %s204 = smul.addr %s203, 2
        %s205 = smul.addr %s204, 8
        %s206 = scalar_lea.vmem %s0, %s205
        %p207 = pneg %p51
        %p208 = pneg %p48
        %p209 = pneg %p72
        %p210 = pneg %p69
        %p211 = pneg %p93
        %p212 = pneg %p90
        %s213 = smul.u32 2, %s23
        %p214 = scmp.lt.s32.totalorder %s22, 1
        %s215 = scalar_select %p214, %s22, 1
        %p216 = scmp.lt.s32.totalorder %s213, 1
        %s217 = scalar_select %p216, %s213, 1
        %s218 = smul.addr %s215, 2
        %s219 = sadd.s32 %s217, %s218
        %s220 = smul.addr %s219, 8
        %s221 = scalar_lea.vmem %s3, %s220
        %p222 = pneg %p121
        %p223 = pneg %p118
        %p224 = pneg %p149
        %p225 = pneg %p146
        %s226 = sand.u32 %s136, 1
        %s227 = scalar_lea.sflag [#allocation3], %s226
        %s228 = sand.u32 %s136, 1
        %s229 = smul.addr %s228, 8
        %s230 = scalar_lea.vmem [#allocation2], %s229
        %p231 = scmp.lt.s32.totalorder %s22, 1
        %s232 = scalar_select %p231, %s22, 1
        %s233 = smul.addr %s232, 2
        %s234 = smul.addr %s233, 8
        %s235 = scalar_lea.vmem %s0, %s234
        %s236 = smul.u32 2, %s23
        %p237 = scmp.lt.s32.totalorder %s22, 1
        %s238 = scalar_select %p237, %s22, 1
        %p239 = scmp.lt.s32.totalorder %s236, 1
        %s240 = scalar_select %p239, %s236, 1
        %s241 = smul.addr %s238, 2
        %s242 = sadd.s32 %s240, %s241
        %s243 = smul.addr %s242, 8
        %s244 = scalar_lea.vmem %s3, %s243
        %s245 = smul.u32 2, %s23
        %s246 = smul.u32 2, %s23
        %s248 = smul.u32 %s23, 16
        %s249 = scalar_lea.vmem %s235, %s248
        %v250 = vld [vmem:[%s249] sm:$0xff]
        %v251 = vld [vmem:[%s249 + $0x8] sm:$0xff]
        %v252 = vpack.c.bf16 %v251, %v250
        %v253 = vld [vmem:[%s1] sm:$0xf]
        %v254 = vld [vmem:[%s2] sm:$0x1]
        %v256 = vlaneseq
        %v257 = vshrl.u32 %v256, 7
        %v258 = vsub.s32 0, %v257
        %v259 = vrot.slane %v254, %v258
        %vm261 = vcmask 64512
        %v263 = vsel %vm261, %v252, 0
        %vm265 = vcmask 1043456
        %v267 = vsel %vm265, %v253, 0
        %269 = vmatprep.subr.bf16.mxu0 0
        %270 = vmatpush1.bf16.msra.mxu0 %v267
        %271 = vmatprep.subr.bf16.mxu0 0
        %272 = vmatpush1.bf16.msra.mxu0 0
        %273 = vmatprep.subr.bf16.mxu0 0
        %274 = vmatpush1.bf16.msra.mxu0 0
        %275 = vmatprep.subr.bf16.mxu0 0
        %276 = vmatpush1.bf16.msra.mxu0 0
        %277 = vmatprep.subr.bf16.mxu0 0
        %278 = vmatpush1.bf16.msra.mxu0 0
        %279 = vmatprep.subr.bf16.mxu0 0
        %280 = vmatpush1.bf16.msra.mxu0 0
        %281 = vmatprep.subr.bf16.mxu0 0
        %282 = vmatpush1.bf16.msra.mxu0 0
        %283 = vmatprep.subr.bf16.mxu0 0
        %284 = vmatpush1.bf16.msra.mxu0 0
        %285 = vmatprep.subr.bf16.mxu0 0
        %286 = vmatpush1.bf16.msra.mxu0 0
        %287 = vmatprep.subr.bf16.mxu0 0
        %288 = vmatpush1.bf16.msra.mxu0 0
        %289 = vmatprep.subr.bf16.mxu0 0
        %290 = vmatpush1.bf16.msra.mxu0 0
        %291 = vmatprep.subr.bf16.mxu0 0
        %292 = vmatpush1.bf16.msra.mxu0 0
        %293 = vmatprep.subr.bf16.mxu0 0
        %294 = vmatpush1.bf16.msra.mxu0 0
        %295 = vmatprep.subr.bf16.mxu0 0
        %296 = vmatpush1.bf16.msra.mxu0 0
        %297 = vmatprep.subr.bf16.mxu0 0
        %298 = vmatpush1.bf16.msra.mxu0 0
        %299 = vmatprep.subr.bf16.mxu0 0
        %300 = vmatpush1.bf16.msra.mxu0 0
        %301 = vmatprep.mubr.bf16.mxu0 0
        %302 = vmatmul.mubr.bf16.gmra.mrb[0].mxu0 %v263
        %v303 = vpop.f32.mrb[0].mxu0
        %v304 = vadd.f32 %v259, %v303
        %v305 = vpop.f32.mrb[0].mxu0
        %v306 = vpop.f32.mrb[0].mxu0
        %v307 = vadd.f32 %v259, %v306
        %v308 = vpop.f32.mrb[0].mxu0
        %309 = vdwg.mxu0
        %v310 = vld [vmem:[%s244] sm:$0xff]
        %v311 = vld [vmem:[%s244 + $0x8] sm:$0xff]
        %313 = vset.pattern.permute.xlu0 0
        %314 = vperm.xlu0 %313, %v310
        %v315 = vpop.permute.xlu0 %314
        %318 = vset.pattern.permute.xlu0 0
        %319 = vperm.xlu0 %318, %v311
        %v320 = vpop.permute.xlu0 %319
        %v322 = vmul.f32 %v304, %v315
        %v323 = vmul.f32 %v307, %v320
        %v324 = vpack.c.bf16 %v323, %v322
        %v326 = vunpack.c.l.b16 %v324
        %v327 = vunpack.c.h.b16 %v324
        %v328 = vpack.c.b16 %v326, %v326
        %v329 = vpack.c.b16 %v327, %v327
        %vm332 = vcmask 125952
        %333 = vst.msk [vmem:[%s230] sm:$0xf] %vm332, %v328
        %334 = vst.msk [vmem:[%s230 + $0x4] sm:$0xf] %vm332, %v329
        %s335 = sand.u32 %s136, 1
        %s336 = scalar_lea.sflag [#allocation3], %s335
        %s337 = sand.u32 %s136, 1
        %s338 = smul.addr %s337, 8
        %s339 = scalar_lea.vmem [#allocation2], %s338
        // Predicated region
        $region37: #{tpu_custom_call.1} parent=35 // pred_check
          %p340 = pneg %p146
        $region38: #{tpu_custom_call.1} parent=35 // pred_check_branch
          %342 = sbr.rel (%p340) target = $region40
        $region39: #{tpu_custom_call.1} parent=35 // pred_region
          %s343 = smul.u32 2, %s23
          %s345 = ssub.s32 128, 128
          %346 = vsyncadd %s336, %s345
          %s347 = smul.addr %s22, 2
          %s348 = sadd.s32 %s343, %s347
          %s349 = smul.addr %s348, 64
          %s350 = scalar_lea.hbm %s4, %s349
          %s351 = sshll.u32 %s339, 4
          %s352 = int_to_ptr.vmem [resolvable:$true] %s351
          %357 = dma.vmem_to_hbm [thread:$0]  %s352, 128, %s350, %s336, 64, 64, 4
        $region40: #{tpu_custom_call.1} parent=35 // pred_fallthru
          _
      $region36: #{tpu_custom_call.1} parent=5 // pred_fallthru
        _
      %p358 = scmp.le.s32.totalorder 2, %s13
      // Predicated region
      $region41: #{tpu_custom_call.1} parent=5 // pred_check
        %p359 = pneg %p358
      $region42: #{tpu_custom_call.1} parent=5 // pred_check_branch
        %361 = sbr.rel (%p359) target = $region44
      $region43: #{tpu_custom_call.1} parent=5 // pred_region
        %s362 = ssub.s32 %s13, 2
        // Predicated region
        $region45: #{tpu_custom_call.1} parent=43 // pred_check
          %p363 = pneg %p152
        $region46: #{tpu_custom_call.1} parent=43 // pred_check_branch
          %365 = sbr.rel (%p363) target = $region48
        $region47: #{tpu_custom_call.1} parent=43 // pred_region
          %s366 = sand.u32 %s137, 1
          %s367 = scalar_lea.sflag [#allocation3], %s366
          %s368 = sand.u32 %s137, 1
          %s369 = smul.addr %s368, 8
          %s370 = scalar_lea.vmem [#allocation2], %s369
          %371 = dma.done %s367, 128
        $region48: #{tpu_custom_call.1} parent=43 // pred_fallthru
          _
      $region44: #{tpu_custom_call.1} parent=5 // pred_fallthru
        _
    $region6: #{tpu_custom_call.1} parent=1 // loop_footer
      %s17 = sadd.s32 1, %s13
    $region7: #{tpu_custom_call.1} parent=1 // loop_footer_branch
      %12 = sbr.rel target = $region3
    $region8: #{tpu_custom_call.1} parent=1 // loop_exit
      _
    %372 = vsyncpa [#allocation3], 1
    %s373 = scalar_lea.sflag [#allocation3], 1
    %374 = vsyncpa %s373, 1

</llo_original>
